<compile_context>
chip_gen: v7x
topology: tpu7x:2x2x1
jax: 0.10.0
libtpu: 0.0.40
codegen_flags: <defaults>
</compile_context>

<pallas_src>
import functools

import jax
import jax.numpy as jnp
from jax import lax
from jax.experimental import pallas as pl
from jax.experimental.pallas import tpu as pltpu


def _vmem_capacity_bytes():
    """Physical VMEM of the current chip, or None if it cannot be queried."""
    try:
        return int(pltpu.get_tpu_info().vmem_capacity_bytes)
    except Exception:
        return None


def _choose_tiles(n_rows, hw, target_block_bytes, itemsize):
    """Pick (tile_rows, tile_hw) so each *input* block is ~target_block_bytes."""
    b = int(itemsize)
    if n_rows * hw * b <= target_block_bytes:
        # Everything fits in one block.
        tile_rows, tile_hw = n_rows, hw
    elif 8 * hw * b <= target_block_bytes:
        # Full rows fit: tile rows only (multiple of 8).
        rows = (target_block_bytes // (hw * b)) // 8 * 8
        tile_rows, tile_hw = min(n_rows, max(8, rows)), hw
    else:
        # Even 8 full rows exceed the target: tile the HW axis too (mult of 128).
        tile_rows = min(n_rows, 8)
        cols = (target_block_bytes // (tile_rows * b)) // 128 * 128
        tile_hw = min(hw, max(128, cols))

    # Megacore (v7x): make sure the 'parallel' row axis has >= 2 blocks whenever
    # possible; ~neutral on single-TC chips (v5e/v6e).
    if n_rows >= 16 and tile_rows > n_rows // 2:
        tile_rows = max(8, (n_rows // 2) // 8 * 8)
    return tile_rows, tile_hw


def _dice_loss_kernel(pred_ref, mask_ref, out_ref, inter_ref, union_ref, *,
                      smooth, n_rows, hw, tile_rows, tile_hw,
                      mask_row_tail, mask_hw_tail):
    """One (tile_rows, tile_hw) block per grid step.

    pred_ref, mask_ref : VMEM (tile_rows, tile_hw)   input dtype (cast in-kernel)
    out_ref            : VMEM (8, 128)  per-row-block partial dice sum at [0,0]
    inter_ref/union_ref: VMEM (tile_rows, 1) per-row partial reductions (f32)
    """
    i = pl.program_id(0)          # row-block index   (parallel)
    j = pl.program_id(1)          # hw-block index    (arbitrary / reduction)
    nj = pl.num_programs(1)

    @pl.when(j == 0)
    def _():
        inter_ref[...] = jnp.zeros_like(inter_ref)
        union_ref[...] = jnp.zeros_like(union_ref)

    x = pred_ref[...].astype(jnp.float32)
    m = mask_ref[...].astype(jnp.float32)

    # sigmoid(x) == 0.5 * tanh(0.5 * x) + 0.5  -> a single EUP op
    p = 0.5 * jnp.tanh(0.5 * x) + 0.5

    if mask_hw_tail:  # static: only when hw % tile_hw != 0
        # (1, tile_hw) iota, broadcast over rows by the select -> no full-tile
        # int32 temporary.
        col = lax.broadcasted_iota(jnp.int32, (1, tile_hw), 1)
        col_ok = col < (hw - j * tile_hw)
        p = jnp.where(col_ok, p, 0.0)
        m = jnp.where(col_ok, m, 0.0)

    if mask_row_tail:  # static: only when n_rows % tile_rows != 0
        # Zero p and m for out-of-range rows (robust against garbage/NaN in the
        # padded HBM read); invalid rows then produce dice == 0 below.
        row = lax.broadcasted_iota(jnp.int32, (tile_rows, 1), 0)
        row_ok = row < (n_rows - i * tile_rows)
        p = jnp.where(row_ok, p, 0.0)
        m = jnp.where(row_ok, m, 0.0)

    inter_ref[...] += jnp.sum(p * m, axis=1, keepdims=True)
    # union = sum(p) + sum(m): no (p + m) full-tile temporary
    union_ref[...] += (jnp.sum(p, axis=1, keepdims=True)
                       + jnp.sum(m, axis=1, keepdims=True))

    @pl.when(j == nj - 1)
    def _():
        dice = 1.0 - (2.0 * inter_ref[...] + smooth) / (union_ref[...] + smooth)
        if mask_row_tail:
            # Belt-and-braces (also covers smooth == 0, where 0/0 would be NaN).
            row = lax.broadcasted_iota(jnp.int32, (tile_rows, 1), 0)
            dice = jnp.where(row < (n_rows - i * tile_rows), dice, 0.0)
        block_sum = jnp.sum(dice)
        r = lax.broadcasted_iota(jnp.int32, (8, 128), 0)
        c = lax.broadcasted_iota(jnp.int32, (8, 128), 1)
        out_ref[...] = jnp.where((r == 0) & (c == 0), block_sum, 0.0)


def dice_loss(pred, mask, smooth=1.0, target_block_bytes=None):
    """Pallas equivalent of Dice_Loss.forward (NCHW inputs, scalar output).

    Inputs may be f32, bf16 or int8/uint8 (the kernel casts to f32 and
    accumulates in f32).  Feeding bf16 pred / bf16-or-int8 mask straight from
    the producer halves (or better) HBM traffic on this bandwidth-bound kernel;
    do NOT cast here in the wrapper (that would add an extra HBM pass).
    """
    N, C, H, W = pred.shape
    assert mask.shape == pred.shape
    n_rows = N * C
    hw = H * W

    pred2d = pred.reshape(n_rows, hw)
    mask2d = mask.reshape(n_rows, hw)

    vmem_cap = _vmem_capacity_bytes()
    if target_block_bytes is None:
        # v5e/v6e: 128 MiB physical VMEM -> ~4 MiB input blocks.
        # v7x (64 MiB) or unknown: stay at ~2 MiB (already near the roofline
        # plateau; bigger blocks risk VMEM OOM with the f32 temporaries).
        if vmem_cap is not None and vmem_cap >= (100 << 20):
            target_block_bytes = 4 << 20
        else:
            target_block_bytes = 2 << 20

    in_itemsize = max(pred.dtype.itemsize, mask.dtype.itemsize)
    tile_rows, tile_hw = _choose_tiles(n_rows, hw, target_block_bytes, in_itemsize)
    grid = (pl.cdiv(n_rows, tile_rows), pl.cdiv(hw, tile_hw))
    num_row_blocks = grid[0]

    # VMEM budget from the *actual* per-buffer bytes:
    #   2 pipeline buffers per input (native dtype) + ~4 tile-sized f32 temps
    #   (p / m / p*m / select) + per-row scratch (lane-padded) + slack.
    in_block_bytes = tile_rows * tile_hw * (pred.dtype.itemsize + mask.dtype.itemsize)
    f32_block_bytes = tile_rows * tile_hw * 4
    vmem_limit = (2 * in_block_bytes
                  + 4 * f32_block_bytes
                  + 2 * tile_rows * 128 * 4
                  + (4 << 20))
    vmem_limit = int(max(vmem_limit, 16 << 20))
    if vmem_cap is not None:
        vmem_limit = min(vmem_limit, vmem_cap - (8 << 20))

    kernel = functools.partial(
        _dice_loss_kernel,
        smooth=float(smooth),
        n_rows=n_rows,
        hw=hw,
        tile_rows=tile_rows,
        tile_hw=tile_hw,
        mask_row_tail=(n_rows % tile_rows != 0),
        mask_hw_tail=(hw % tile_hw != 0),
    )

    cost = pl.CostEstimate(
        flops=6 * n_rows * hw,
        transcendentals=n_rows * hw,
        bytes_accessed=(n_rows * hw * (pred.dtype.itemsize + mask.dtype.itemsize)
                        + num_row_blocks * 8 * 128 * 4),
    )

    # NOTE: if xprof ever shows per-step DMA-start gaps, add
    # pipeline_mode=pl.Buffered(3) to the two input BlockSpecs and grow
    # vmem_limit by one extra block per input.
    partials = pl.pallas_call(
        kernel,
        out_shape=jax.ShapeDtypeStruct((num_row_blocks * 8, 128), jnp.float32),
        grid_spec=pltpu.PrefetchScalarGridSpec(
            num_scalar_prefetch=0,
            grid=grid,
            in_specs=[
                pl.BlockSpec((tile_rows, tile_hw), lambda i, j: (i, j)),
                pl.BlockSpec((tile_rows, tile_hw), lambda i, j: (i, j)),
            ],
            out_specs=pl.BlockSpec((8, 128), lambda i, j: (i, 0)),
            scratch_shapes=[
                pltpu.VMEM((tile_rows, 1), jnp.float32),  # intersection partials
                pltpu.VMEM((tile_rows, 1), jnp.float32),  # union partials
            ],
        ),
        compiler_params=pltpu.CompilerParams(
            dimension_semantics=("parallel", "arbitrary"),
            vmem_limit_bytes=vmem_limit,
        ),
        cost_estimate=cost,
    )(pred2d, mask2d)

    # Tiny finish: one partial sum per row block sits at [8*i, 0]; rest are 0.
    return jnp.sum(partials) / jnp.float32(n_rows)


def dice_loss_ref(pred, mask, smooth=1.0):
    """Pure-JAX reference matching the PyTorch module exactly."""
    p = jax.nn.sigmoid(pred.astype(jnp.float32))
    m = mask.astype(jnp.float32)
    inter = jnp.sum(p * m, axis=(2, 3))
    union = jnp.sum(p + m, axis=(2, 3))
    dice = 1.0 - (2.0 * inter + smooth) / (union + smooth)
    return jnp.mean(dice)


if __name__ == "__main__":
    key = jax.random.PRNGKey(0)

    # Test 1: main small case, f32 inputs (single block, grid (1,1)).
    k1, k2 = jax.random.split(key)
    N, C, H, W = 2, 4, 16, 16
    pred = jax.random.normal(k1, (N, C, H, W), dtype=jnp.float32)
    mask = (jax.random.uniform(k2, (N, C, H, W)) > 0.5).astype(jnp.float32)
    out = jax.block_until_ready(dice_loss(pred, mask, smooth=1.0))
    ref = dice_loss_ref(pred, mask, smooth=1.0)
    assert jnp.allclose(out, ref, atol=1e-5, rtol=1e-5), (out, ref)

    # Test 2: bf16 inputs (narrow-dtype contract) + n_rows >= 16 so the
    # megacore row-split engages (tile_rows capped -> grid[0] == 2).
    k3, k4 = jax.random.split(k1)
    pred2 = jax.random.normal(k3, (4, 4, 16, 16), dtype=jnp.float32).astype(jnp.bfloat16)
    mask2 = (jax.random.uniform(k4, (4, 4, 16, 16)) > 0.5).astype(jnp.bfloat16)
    out2 = jax.block_until_ready(dice_loss(pred2, mask2, smooth=1.0))
    ref2 = dice_loss_ref(pred2, mask2, smooth=1.0)
    assert jnp.allclose(out2, ref2, atol=1e-5, rtol=1e-5), (out2, ref2)

    # Test 3: force HW tiling + row-tail + hw-tail masking (tiny block target).
    k5, k6 = jax.random.split(k2)
    pred3 = jax.random.normal(k5, (3, 5, 16, 24), dtype=jnp.float32)   # n_rows=15, hw=384
    mask3 = (jax.random.uniform(k6, (3, 5, 16, 24)) > 0.5).astype(jnp.float32)
    out3 = jax.block_until_ready(dice_loss(pred3, mask3, smooth=1.0,
                                           target_block_bytes=8 * 1024))
    ref3 = dice_loss_ref(pred3, mask3, smooth=1.0)
    assert jnp.allclose(out3, ref3, atol=1e-5, rtol=1e-5), (out3, ref3)

    # Test 4: force row-only tiling with full rows (multi row-block, nj == 1).
    k7, k8 = jax.random.split(k3)
    pred4 = jax.random.normal(k7, (8, 4, 16, 16), dtype=jnp.float32)   # n_rows=32
    mask4 = (jax.random.uniform(k8, (8, 4, 16, 16)) > 0.5).astype(jnp.float32)
    out4 = jax.block_until_ready(dice_loss(pred4, mask4, smooth=1.0,
                                           target_block_bytes=16 * 1024))
    ref4 = dice_loss_ref(pred4, mask4, smooth=1.0)
    assert jnp.allclose(out4, ref4, atol=1e-5, rtol=1e-5), (out4, ref4)

    print("KERNEL_OK")
</pallas_src>

<mosaic_0001>
module attributes {stable_mosaic.version = 11 : i64} {
  func.func @_dice_loss_kernel(%arg0: i32, %arg1: i32, %arg2: memref<8x256xf32, #tpu.memory_space<vmem>>, %arg3: memref<8x256xf32, #tpu.memory_space<vmem>>, %arg4: memref<8x128xf32, #tpu.memory_space<vmem>>, %arg5: memref<8x1xf32, #tpu.memory_space<vmem>>, %arg6: memref<8x1xf32, #tpu.memory_space<vmem>>) attributes {dimension_semantics = [#tpu.dimension_semantics<parallel>, #tpu.dimension_semantics<arbitrary>], iteration_bounds = array<i64: 1, 1>, scalar_prefetch = 0 : i64, scratch_operands = 2 : i64, tpu.core_type = #tpu.core_type<tc>, window_params = [{transform_indices = @transform_0, window_bounds = array<i64: 8, 256>}, {transform_indices = @transform_1, window_bounds = array<i64: 8, 256>}, {transform_indices = @transform_2, window_bounds = array<i64: 8, 128>}]} {
    %c0_i32 = arith.constant 0 : i32
    %0 = arith.cmpi eq, %arg1, %c0_i32 : i32
    %1 = arith.extui %0 : i1 to i32
    %c0_i32_0 = arith.constant 0 : i32
    %2 = arith.cmpi ne, %1, %c0_i32_0 : i32
    scf.if %2 {
      %cst_19 = arith.constant 0.000000e+00 : f32
      %29 = vector.broadcast %cst_19 : f32 to vector<8x1xf32>
      %c0_20 = arith.constant 0 : index
      %c0_21 = arith.constant 0 : index
      %30 = vector.load %arg5[%c0_20, %c0_21] : memref<8x1xf32, #tpu.memory_space<vmem>>, vector<8x1xf32>
      tpu.vector_store %arg5[%c0_20, %c0_21], %29 {strides = array<i32>} : memref<8x1xf32, #tpu.memory_space<vmem>>, vector<8x1xf32>,
      %cst_22 = arith.constant 0.000000e+00 : f32
      %31 = vector.broadcast %cst_22 : f32 to vector<8x1xf32>
      %c0_23 = arith.constant 0 : index
      %c0_24 = arith.constant 0 : index
      %32 = vector.load %arg6[%c0_23, %c0_24] : memref<8x1xf32, #tpu.memory_space<vmem>>, vector<8x1xf32>
      tpu.vector_store %arg6[%c0_23, %c0_24], %31 {strides = array<i32>} : memref<8x1xf32, #tpu.memory_space<vmem>>, vector<8x1xf32>,
    } else {
    }
    %c0 = arith.constant 0 : index
    %c0_1 = arith.constant 0 : index
    %3 = vector.load %arg2[%c0, %c0_1] : memref<8x256xf32, #tpu.memory_space<vmem>>, vector<8x256xf32>
    %c0_2 = arith.constant 0 : index
    %c0_3 = arith.constant 0 : index
    %4 = vector.load %arg3[%c0_2, %c0_3] : memref<8x256xf32, #tpu.memory_space<vmem>>, vector<8x256xf32>
    %cst = arith.constant 5.000000e-01 : f32
    %5 = vector.broadcast %cst : f32 to vector<8x256xf32>
    %6 = arith.mulf %5, %3 : vector<8x256xf32>
    %7 = math.tanh %6 : vector<8x256xf32>
    %cst_4 = arith.constant 5.000000e-01 : f32
    %8 = vector.broadcast %cst_4 : f32 to vector<8x256xf32>
    %9 = arith.mulf %8, %7 : vector<8x256xf32>
    %cst_5 = arith.constant 5.000000e-01 : f32
    %10 = vector.broadcast %cst_5 : f32 to vector<8x256xf32>
    %11 = arith.addf %9, %10 : vector<8x256xf32>
    %c0_6 = arith.constant 0 : index
    %c0_7 = arith.constant 0 : index
    %12 = vector.load %arg5[%c0_6, %c0_7] : memref<8x1xf32, #tpu.memory_space<vmem>>, vector<8x1xf32>
    %13 = arith.mulf %11, %4 : vector<8x256xf32>
    %cst_8 = arith.constant dense<0.000000e+00> : vector<8xf32>
    %14 = vector.multi_reduction <add>, %13, %cst_8 [1] : vector<8x256xf32> to vector<8xf32>
    %15 = vector.shape_cast %14 : vector<8xf32> to vector<8x1xf32>
    %16 = arith.addf %12, %15 : vector<8x1xf32>
    %c0_9 = arith.constant 0 : index
    %c0_10 = arith.constant 0 : index
    %17 = vector.load %arg5[%c0_9, %c0_10] : memref<8x1xf32, #tpu.memory_space<vmem>>, vector<8x1xf32>
    tpu.vector_store %arg5[%c0_9, %c0_10], %16 {strides = array<i32>} : memref<8x1xf32, #tpu.memory_space<vmem>>, vector<8x1xf32>,
    %c0_11 = arith.constant 0 : index
    %c0_12 = arith.constant 0 : index
    %18 = vector.load %arg6[%c0_11, %c0_12] : memref<8x1xf32, #tpu.memory_space<vmem>>, vector<8x1xf32>
    %cst_13 = arith.constant dense<0.000000e+00> : vector<8xf32>
    %19 = vector.multi_reduction <add>, %11, %cst_13 [1] : vector<8x256xf32> to vector<8xf32>
    %20 = vector.shape_cast %19 : vector<8xf32> to vector<8x1xf32>
    %cst_14 = arith.constant dense<0.000000e+00> : vector<8xf32>
    %21 = vector.multi_reduction <add>, %4, %cst_14 [1] : vector<8x256xf32> to vector<8xf32>
    %22 = vector.shape_cast %21 : vector<8xf32> to vector<8x1xf32>
    %23 = arith.addf %20, %22 : vector<8x1xf32>
    %24 = arith.addf %18, %23 : vector<8x1xf32>
    %c0_15 = arith.constant 0 : index
    %c0_16 = arith.constant 0 : index
    %25 = vector.load %arg6[%c0_15, %c0_16] : memref<8x1xf32, #tpu.memory_space<vmem>>, vector<8x1xf32>
    tpu.vector_store %arg6[%c0_15, %c0_16], %24 {strides = array<i32>} : memref<8x1xf32, #tpu.memory_space<vmem>>, vector<8x1xf32>,
    %c0_i32_17 = arith.constant 0 : i32
    %26 = arith.cmpi eq, %arg1, %c0_i32_17 : i32
    %27 = arith.extui %26 : i1 to i32
    %c0_i32_18 = arith.constant 0 : i32
    %28 = arith.cmpi ne, %27, %c0_i32_18 : i32
    scf.if %28 {
      %c0_19 = arith.constant 0 : index
      %c0_20 = arith.constant 0 : index
      %29 = vector.load %arg5[%c0_19, %c0_20] : memref<8x1xf32, #tpu.memory_space<vmem>>, vector<8x1xf32>
      %cst_21 = arith.constant 2.000000e+00 : f32
      %30 = vector.broadcast %cst_21 : f32 to vector<8x1xf32>
      %31 = arith.mulf %30, %29 : vector<8x1xf32>
      %cst_22 = arith.constant 1.000000e+00 : f32
      %32 = vector.broadcast %cst_22 : f32 to vector<8x1xf32>
      %33 = arith.addf %31, %32 : vector<8x1xf32>
      %c0_23 = arith.constant 0 : index
      %c0_24 = arith.constant 0 : index
      %34 = vector.load %arg6[%c0_23, %c0_24] : memref<8x1xf32, #tpu.memory_space<vmem>>, vector<8x1xf32>
      %cst_25 = arith.constant 1.000000e+00 : f32
      %35 = vector.broadcast %cst_25 : f32 to vector<8x1xf32>
      %36 = arith.addf %34, %35 : vector<8x1xf32>
      %37 = arith.divf %33, %36 : vector<8x1xf32>
      %cst_26 = arith.constant 1.000000e+00 : f32
      %38 = vector.broadcast %cst_26 : f32 to vector<8x1xf32>
      %39 = arith.subf %38, %37 : vector<8x1xf32>
      %40 = vector.shape_cast %39 : vector<8x1xf32> to vector<1x8x1xf32>
      %cst_27 = arith.constant dense<0.000000e+00> : vector<1xf32>
      %41 = vector.multi_reduction <add>, %40, %cst_27 [1, 2] : vector<1x8x1xf32> to vector<1xf32>
      %42 = vector.shape_cast %41 : vector<1xf32> to vector<1x1x1xf32>
      %43 = vector.extract %42[0, 0, 0] : f32 from vector<1x1x1xf32>
      %44 = tpu.iota {dimensions = array<i32: 0>} : vector<8x128xi32>
      %45 = tpu.iota {dimensions = array<i32: 1>} : vector<8x128xi32>
      %c0_i32_28 = arith.constant 0 : i32
      %46 = vector.broadcast %c0_i32_28 : i32 to vector<8x128xi32>
      %47 = arith.cmpi eq, %44, %46 : vector<8x128xi32>
      %c0_i32_29 = arith.constant 0 : i32
      %48 = vector.broadcast %c0_i32_29 : i32 to vector<8x128xi32>
      %49 = arith.cmpi eq, %45, %48 : vector<8x128xi32>
      %50 = arith.andi %47, %49 : vector<8x128xi1>
      %cst_30 = arith.constant 0.000000e+00 : f32
      %51 = vector.broadcast %43 : f32 to vector<8x128xf32>
      %52 = vector.broadcast %cst_30 : f32 to vector<8x128xf32>
      %53 = arith.select %50, %51, %52 : vector<8x128xi1>, vector<8x128xf32>
      %c0_31 = arith.constant 0 : index
      %c0_32 = arith.constant 0 : index
      %54 = vector.load %arg4[%c0_31, %c0_32] : memref<8x128xf32, #tpu.memory_space<vmem>>, vector<8x128xf32>
      tpu.vector_store %arg4[%c0_31, %c0_32], %53 {strides = array<i32>} : memref<8x128xf32, #tpu.memory_space<vmem>>, vector<8x128xf32>,
    } else {
    }
    return
  }
  func.func @transform_0(%arg0: i32, %arg1: i32) -> (i32, i32) {
    %c0_i32 = arith.constant 0 : i32
    return %arg0, %arg1 : i32, i32
  }
  func.func @transform_1(%arg0: i32, %arg1: i32) -> (i32, i32) {
    %c0_i32 = arith.constant 0 : i32
    return %arg0, %arg1 : i32, i32
  }
  func.func @transform_2(%arg0: i32, %arg1: i32) -> (i32, i32) {
    %c0_i32 = arith.constant 0 : i32
    %c0_i32_0 = arith.constant 0 : i32
    return %arg0, %c0_i32 : i32, i32
  }
}

</mosaic_0001>

<llo_original>
// kernel: tpu_custom_call.1
$region0: #{tpu_custom_call.1}
  #allocation0 [shape = 'u32[]', space=smem, size = 0x4, offset = 0x4, fixed_abs, tag = 'smem constant byte address 0x4 - core index']
  #allocation1 [shape = 'u32[144,128]{1,0:T(1,128)}', space=vmem, size = 0x12000, scoped, tag = 'internal scratch']
  #allocation2 [shape = 'f32[8,1]{1,0:T(8,128)}', space=vmem, size = 0x1000, scoped, tag = 'scratch operand']
  #allocation3 [shape = 'f32[8,1]{1,0:T(8,128)}', space=vmem, size = 0x1000, scoped, tag = 'scratch operand']
  %s0 = inlined_call_operand.hbm [shape: f32[8,256], index: 0, kind: input, shape index: {}]
  %s1 = inlined_call_operand.hbm [shape: f32[8,256], index: 1, kind: input, shape index: {}]
  %s2 = inlined_call_operand.hbm [shape: f32[8,128], index: 2, kind: output, shape index: {}]
  %s3 = sld [smem:[#allocation0]]
  $region34: #{tpu_custom_call.1} parent=0
    _
  %s5 = ssub.s32 1, %s3
  %s6 = scalar_select 0, %s5, %s3
  $region1: #{tpu_custom_call.1} parent=0
    #allocation4 [shape = 'u8[8192]{0}', space=vmem, size = 0x2000, scoped, tag = 'input window, operand 0, single buffered']
    #allocation5 [shape = 's32[1]{0}', space=sflag, size = 0x4, scoped, tag = 'scoped memory for tpu_custom_call.1']
    #allocation6 [shape = 's32[1]{0}', space=sflag, size = 0x4, scoped, tag = 'scoped memory for tpu_custom_call.1']
    #allocation7 [shape = 'u8[8192]{0}', space=vmem, size = 0x2000, scoped, tag = 'input window, operand 1, single buffered']
    #allocation8 [shape = 's32[1]{0}', space=sflag, size = 0x4, scoped, tag = 'scoped memory for tpu_custom_call.1']
    #allocation9 [shape = 'u8[4096]{0}', space=vmem, size = 0x1000, scoped, tag = 'output window, operand 0, single buffered']
    %7 = vsyncpa [#allocation5], 0
    %8 = vsyncpa [#allocation8], 0
    %9 = vsyncpa [#allocation6], 0
    // Predicated region
    $region2: #{tpu_custom_call.1} parent=1 // pred_check
      _
    $region3: #{tpu_custom_call.1} parent=1 // pred_check_branch
      %11 = sbr.rel (0) target = $region5
    $region4: #{tpu_custom_call.1} parent=1 // pred_region
      %s13 = ssub.s32 256, 256
      %14 = vsyncadd [#allocation5], %s13
      %s16 = sshll.u32 [#allocation4], 4
      %s17 = int_to_ptr.vmem [resolvable:$true] %s16
      %19 = dma.hbm_to_vmem [thread:$0]  %s0, 256, %s17, [#allocation5]
    $region5: #{tpu_custom_call.1} parent=1 // pred_fallthru
      _
    // Predicated region
    $region6: #{tpu_custom_call.1} parent=1 // pred_check
      _
    $region7: #{tpu_custom_call.1} parent=1 // pred_check_branch
      %21 = sbr.rel (0) target = $region9
    $region8: #{tpu_custom_call.1} parent=1 // pred_region
      %s23 = ssub.s32 256, 256
      %24 = vsyncadd [#allocation8], %s23
      %s26 = sshll.u32 [#allocation7], 4
      %s27 = int_to_ptr.vmem [resolvable:$true] %s26
      %29 = dma.hbm_to_vmem [thread:$0]  %s1, 256, %s27, [#allocation8]
    $region9: #{tpu_custom_call.1} parent=1 // pred_fallthru
      _
    // Predicated region
    $region10: #{tpu_custom_call.1} parent=1 // pred_check
      _
    $region11: #{tpu_custom_call.1} parent=1 // pred_check_branch
      %31 = sbr.rel (0) target = $region13
    $region12: #{tpu_custom_call.1} parent=1 // pred_region
      %32 = dma.done [#allocation5], 256
    $region13: #{tpu_custom_call.1} parent=1 // pred_fallthru
      _
    // Predicated region
    $region14: #{tpu_custom_call.1} parent=1 // pred_check
      _
    $region15: #{tpu_custom_call.1} parent=1 // pred_check_branch
      %34 = sbr.rel (0) target = $region17
    $region16: #{tpu_custom_call.1} parent=1 // pred_region
      %35 = dma.done [#allocation8], 256
    $region17: #{tpu_custom_call.1} parent=1 // pred_fallthru
      _
    %p36 = scmp.eq.s32.totalorder 0, 0
    // Predicated region
    $region18: #{tpu_custom_call.1} parent=1 // pred_check
      %p37 = pneg %p36
    $region19: #{tpu_custom_call.1} parent=1 // pred_check_branch
      %39 = sbr.rel (%p37) target = $region21
    $region20: #{tpu_custom_call.1} parent=1 // pred_region
      %vm40 = vcmask 7168
      %41 = vst.msk [vmem:[#allocation2] sm:$0xff] %vm40, 0.0
      %42 = vst.msk [vmem:[#allocation3] sm:$0xff] %vm40, 0.0
    $region21: #{tpu_custom_call.1} parent=1 // pred_fallthru
      _
    %v43 = vld [vmem:[#allocation4] sm:$0xff]
    %v44 = vld [vmem:[#allocation4 + $0x8] sm:$0xff]
    %v45 = vld [vmem:[#allocation7] sm:$0xff]
    %v46 = vld [vmem:[#allocation7 + $0x8] sm:$0xff]
    %v47 = vmul.f32 %v43, 0.5
    %v48 = vmul.f32 %v44, 0.5
    %v49 = vtanh.pop %v47
    %v50 = vtanh.pop %v48
    %v51 = vmul.f32 %v49, 0.5
    %v52 = vmul.f32 %v50, 0.5
    %v53 = vadd.f32 %v51, 0.5
    %v54 = vadd.f32 %v52, 0.5
    %v55 = vld [vmem:[#allocation2] sm:$0xff]
    %v56 = vmul.f32 %v53, %v45
    %v57 = vmul.f32 %v54, %v46
    %v58 = vadd.f32 %v56, %v57
    %59 = vadd.xlane.f32.xlu0 %v58
    %v60 = vpop.xlane.xlu0 %59
    %v61 = vadd.f32 %v55, %v60
    %vm62 = vcmask 7168
    %63 = vst.msk [vmem:[#allocation2] sm:$0xff] %vm62, %v61
    %v64 = vld [vmem:[#allocation3] sm:$0xff]
    %v65 = vadd.f32 %v53, %v54
    %66 = vadd.xlane.f32.xlu0 %v65
    %v67 = vpop.xlane.xlu0 %66
    %v68 = vadd.f32 %v45, %v46
    %69 = vadd.xlane.f32.xlu0 %v68
    %v70 = vpop.xlane.xlu0 %69
    %v71 = vadd.f32 %v67, %v70
    %v72 = vadd.f32 %v64, %v71
    %73 = vst.msk [vmem:[#allocation3] sm:$0xff] %vm62, %v72
    // Predicated region
    $region22: #{tpu_custom_call.1} parent=1 // pred_check
      %p74 = pneg %p36
    $region23: #{tpu_custom_call.1} parent=1 // pred_check_branch
      %76 = sbr.rel (%p74) target = $region25
    $region24: #{tpu_custom_call.1} parent=1 // pred_region
      %v77 = vld [vmem:[#allocation2] sm:$0xff]
      %v78 = vmul.f32 %v77, 2.0
      %v79 = vadd.f32 %v78, 1.0
      %v80 = vld [vmem:[#allocation3] sm:$0xff]
      %v81 = vadd.f32 %v80, 1.0
      %v82 = vrcp.pop %v81
      %v83 = vmul.f32 %v79, %v82
      %v84 = vsub.f32 1.0, %v83
      %v85 = vsel %vm62, %v84, 0.0
      %86 = vadd.xlane.f32.xlu0 %v85
      %v87 = vpop.xlane.xlu0 %86
      %v88 = vrot.slane %v87, 4
      %v89 = vadd.f32 %v87, %v88
      %v90 = vrot.slane %v89, 2
      %v91 = vadd.f32 %v89, %v90
      %v92 = vrot.slane %v91, 1
      %v93 = vadd.f32 %v91, %v92
      %s94 = vtos %v93
      %v95 = vlaneseq
      %v96 = vshrl.u32 %v95, 7
      %v97 = vlaneseq
      %v98 = vand.u32 %v97, 127
      %vm99 = vcmp.eq.s32.totalorder %v96, 0
      %vm100 = vcmp.eq.s32.totalorder %v98, 0
      %vm101 = vmand %vm99, %vm100
      %v102 = vstv %s94
      %v103 = vsel %vm101, %v102, 0.0
      %104 = vst [vmem:[#allocation9] sm:$0xff] %v103
    $region25: #{tpu_custom_call.1} parent=1 // pred_fallthru
      _
    // Predicated region
    $region26: #{tpu_custom_call.1} parent=1 // pred_check
      _
    $region27: #{tpu_custom_call.1} parent=1 // pred_check_branch
      %106 = sbr.rel (0) target = $region29
    $region28: #{tpu_custom_call.1} parent=1 // pred_region
      %s108 = ssub.s32 128, 128
      %109 = vsyncadd [#allocation6], %s108
      %s111 = sshll.u32 [#allocation9], 4
      %s112 = int_to_ptr.vmem [resolvable:$true] %s111
      %114 = dma.vmem_to_hbm [thread:$0]  %s112, 128, %s2, [#allocation6]
    $region29: #{tpu_custom_call.1} parent=1 // pred_fallthru
      _
    // Predicated region
    $region30: #{tpu_custom_call.1} parent=1 // pred_check
      _
    $region31: #{tpu_custom_call.1} parent=1 // pred_check_branch
      %116 = sbr.rel (0) target = $region33
    $region32: #{tpu_custom_call.1} parent=1 // pred_region
      %117 = dma.done [#allocation6], 128
    $region33: #{tpu_custom_call.1} parent=1 // pred_fallthru
      _
    %118 = vsyncpa [#allocation5], 1
    %119 = vsyncpa [#allocation8], 1
    %120 = vsyncpa [#allocation6], 1

</llo_original>
